<compile_context>
chip_gen: v7x
topology: tpu7x:2x2x1
jax: 0.10.0
libtpu: 0.0.40
codegen_flags: <defaults>
</compile_context>

<pallas_src>
import jax
import jax.numpy as jnp
from jax.experimental import pallas as pl
from jax.experimental.pallas import tpu as pltpu

_P = 128  # node ids packed per kernel row (one full lane group)


def _one_hot_kernel(ids_ref, e_ref, cls_ref, out_ref):
    """ids_ref: [T, 128] int32  -- 128 node ids per row.
       e_ref:   [128, L]        -- selection matrix, E[p, l] = 1 iff l // num_types == p.
       cls_ref: [1, L] float32  -- cls[l] = l % num_types.
       out_ref: [T, L] out_dtype -- packed one-hot, L = 128 * num_types (lane dense)."""
    ids = ids_ref[...].astype(e_ref.dtype)
    prec = jax.lax.Precision.HIGHEST if e_ref.dtype == jnp.float32 else None
    # expanded[t, l] = ids[t, l // num_types]  (each column of E has exactly one 1,
    # so the MXU result is exact for valid ids).
    expanded = jnp.dot(ids, e_ref[...], preferred_element_type=jnp.float32,
                       precision=prec)
    out_ref[...] = (expanded == cls_ref[...]).astype(out_ref.dtype)


def one_hot_atom_encoding(elem_map, *, num_types, out_dtype=jnp.float32,
                          set_features=True, block_vmem_bytes=4 * 1024 * 1024):
    """elem_map: [N, 1] (or [N]) integer atom-type indices.

    Returns {'node_attr': one_hot[, 'node_features': one_hot]} with one_hot of
    shape [N, num_types] and dtype `out_dtype` (== pos.dtype in the torch
    module); both keys reference the SAME array."""
    if num_types < 1:
        raise ValueError("num_types must be >= 1")
    N = elem_map.shape[0]
    ids = jnp.reshape(elem_map, (-1,)).astype(jnp.int32)        # == squeeze(-1)

    if N == 0:
        one_hot = jnp.zeros((0, num_types), dtype=out_dtype)
        return ({"node_attr": one_hot, "node_features": one_hot}
                if set_features else {"node_attr": one_hot})

    L = _P * num_types                        # packed output row width (multiple of 128)
    itemsize = jnp.dtype(out_dtype).itemsize
    sub = {1: 32, 2: 16}.get(itemsize, 8)     # sublane granularity of out dtype

    rows = pl.cdiv(N, _P)                     # packed rows actually needed
    if rows * _P != N:                        # pad ids to a whole packed row (<= 127 ints)
        ids = jnp.pad(ids, (0, rows * _P - N))
    ids_in = ids.reshape(rows, _P)

    # Rows per grid step: multiple of `sub`, sized so (out block + id block) fits
    # the per-buffer VMEM budget.  Final grid block may be ragged (masked writeback).
    row_bytes = L * itemsize + _P * 4
    if rows <= sub:
        block_T = rows                        # single block == full first dim
    else:
        block_T = max(sub, min((block_vmem_bytes // row_bytes) // sub * sub,
                               (rows // sub) * sub))
    grid = (pl.cdiv(rows, block_T),)

    # Constant operands (constant index_map -> fetched once, VMEM resident).
    # bf16 is exact for integer ids < 256; fall back to f32 for huge num_types.
    mxu_dtype = jnp.bfloat16 if num_types <= 256 else jnp.float32
    l_idx = jnp.arange(L, dtype=jnp.int32)[None, :]               # [1, L]
    p_idx = jnp.arange(_P, dtype=jnp.int32)[:, None]              # [128, 1]
    E = (l_idx // num_types == p_idx).astype(mxu_dtype)           # [128, L]
    cls = (l_idx % num_types).astype(jnp.float32)                 # [1, L]

    out_packed = pl.pallas_call(
        _one_hot_kernel,
        out_shape=jax.ShapeDtypeStruct((rows, L), out_dtype),
        grid=grid,
        in_specs=[pl.BlockSpec((block_T, _P), lambda i: (i, 0)),
                  pl.BlockSpec((_P, L), lambda i: (0, 0)),
                  pl.BlockSpec((1, L), lambda i: (0, 0))],
        out_specs=pl.BlockSpec((block_T, L), lambda i: (i, 0)),
        compiler_params=pltpu.CompilerParams(
            dimension_semantics=("parallel",)),
    )(ids_in, E, cls)

    # (rows, 128*num_types) -> (rows*128, num_types): free row-major reshape.
    one_hot = out_packed.reshape(rows * _P, num_types)
    if rows * _P != N:
        one_hot = one_hot[:N]                 # only pays a copy when N % 128 != 0

    data = {"node_attr": one_hot}
    if set_features:
        data["node_features"] = one_hot       # same array: no duplicate HBM write
    return data


if __name__ == "__main__":
    key = jax.random.PRNGKey(0)

    # --- Test 1: small shapes, jit-wrapped, num_types=4 -------------------
    num_types = 4
    N = 16
    k_elem, k_pos = jax.random.split(key)
    elem_map = jax.random.randint(k_elem, (N, 1), 0, num_types, dtype=jnp.int32)
    pos = jax.random.normal(k_pos, (N, 3), dtype=jnp.float32)  # only its dtype matters

    f = jax.jit(lambda em: one_hot_atom_encoding(
        em, num_types=num_types, out_dtype=pos.dtype, set_features=True))
    out = f(elem_map)
    jax.block_until_ready(out)

    ref = jax.nn.one_hot(elem_map.squeeze(-1), num_types, dtype=pos.dtype)
    assert out["node_attr"].shape == (N, num_types)
    assert out["node_attr"].dtype == pos.dtype
    assert jnp.array_equal(out["node_attr"], ref)
    assert jnp.array_equal(out["node_features"], ref)

    # --- Test 2: multi-block grid, ragged rows, num_types not dividing 128 -
    N2, nt2 = 2600, 5
    em2 = jax.random.randint(jax.random.PRNGKey(1), (N2, 1), 0, nt2, dtype=jnp.int32)
    out2 = one_hot_atom_encoding(em2, num_types=nt2, out_dtype=jnp.float32,
                                 block_vmem_bytes=16 * 1024)   # force grid > 1 + ragged tail
    jax.block_until_ready(out2)
    ref2 = jax.nn.one_hot(em2.squeeze(-1), nt2, dtype=jnp.float32)
    assert jnp.array_equal(out2["node_attr"], ref2)
    assert jnp.array_equal(out2["node_features"], ref2)

    # --- Test 3: bf16 output, N multiple of 128 (no pad / no slice), no features
    N3, nt3 = 384, 7
    em3 = jax.random.randint(jax.random.PRNGKey(2), (N3, 1), 0, nt3, dtype=jnp.int32)
    out3 = one_hot_atom_encoding(em3, num_types=nt3, out_dtype=jnp.bfloat16,
                                 set_features=False)
    jax.block_until_ready(out3)
    ref3 = jax.nn.one_hot(em3.squeeze(-1), nt3, dtype=jnp.bfloat16)
    assert jnp.array_equal(out3["node_attr"], ref3)
    assert "node_features" not in out3

    print("KERNEL_OK")
</pallas_src>

<mosaic_0001>
module attributes {stable_mosaic.version = 11 : i64} {
  func.func @_one_hot_kernel(%arg0: i32, %arg1: memref<1x128xi32, #tpu.memory_space<vmem>>, %arg2: memref<128x512xbf16, #tpu.memory_space<vmem>>, %arg3: memref<1x512xf32, #tpu.memory_space<vmem>>, %arg4: memref<1x512xf32, #tpu.memory_space<vmem>>) attributes {dimension_semantics = [#tpu.dimension_semantics<parallel>], iteration_bounds = array<i64: 1>, scalar_prefetch = 0 : i64, scratch_operands = 0 : i64, tpu.core_type = #tpu.core_type<tc>, window_params = [{transform_indices = @transform_0, window_bounds = array<i64: 1, 128>}, {pipeline_mode = #tpu.pipeline_mode<synchronous>, transform_indices = @transform_1, window_bounds = array<i64: 128, 512>}, {pipeline_mode = #tpu.pipeline_mode<synchronous>, transform_indices = @transform_2, window_bounds = array<i64: 1, 512>}, {transform_indices = @transform_3, window_bounds = array<i64: 1, 512>}]} {
    %c0 = arith.constant 0 : index
    %c0_0 = arith.constant 0 : index
    %0 = vector.load %arg1[%c0, %c0_0] : memref<1x128xi32, #tpu.memory_space<vmem>>, vector<1x128xi32>
    %1 = arith.sitofp %0 : vector<1x128xi32> to vector<1x128xbf16>
    %c0_1 = arith.constant 0 : index
    %c0_2 = arith.constant 0 : index
    %2 = vector.load %arg2[%c0_1, %c0_2] : memref<128x512xbf16, #tpu.memory_space<vmem>>, vector<128x512xbf16>
    %cst = arith.constant dense<0.000000e+00> : vector<1x512xf32>
    %3 = tpu.matmul %1, %2, %cst {dimension_numbers = #tpu.dot_dimension_numbers<[1], [0], [0], [1], [0, 0, 1, 1], [], []>} : vector<1x128xbf16>, vector<128x512xbf16>, vector<1x512xf32> -> vector<1x512xf32>
    %c0_3 = arith.constant 0 : index
    %c0_4 = arith.constant 0 : index
    %4 = vector.load %arg3[%c0_3, %c0_4] : memref<1x512xf32, #tpu.memory_space<vmem>>, vector<1x512xf32>
    %5 = arith.cmpf oeq, %3, %4 : vector<1x512xf32>
    %6 = arith.extui %5 : vector<1x512xi1> to vector<1x512xi32>
    %7 = arith.sitofp %6 : vector<1x512xi32> to vector<1x512xf32>
    %c0_5 = arith.constant 0 : index
    %c0_6 = arith.constant 0 : index
    %8 = vector.load %arg4[%c0_5, %c0_6] : memref<1x512xf32, #tpu.memory_space<vmem>>, vector<1x512xf32>
    tpu.vector_store %arg4[%c0_5, %c0_6], %7 {strides = array<i32>} : memref<1x512xf32, #tpu.memory_space<vmem>>, vector<1x512xf32>,
    return
  }
  func.func @transform_0(%arg0: i32) -> (i32, i32) {
    %c0_i32 = arith.constant 0 : i32
    %c0_i32_0 = arith.constant 0 : i32
    return %arg0, %c0_i32 : i32, i32
  }
  func.func @transform_1(%arg0: i32) -> (i32, i32) {
    %c0_i32 = arith.constant 0 : i32
    %c0_i32_0 = arith.constant 0 : i32
    %c0_i32_1 = arith.constant 0 : i32
    return %c0_i32, %c0_i32_0 : i32, i32
  }
  func.func @transform_2(%arg0: i32) -> (i32, i32) {
    %c0_i32 = arith.constant 0 : i32
    %c0_i32_0 = arith.constant 0 : i32
    %c0_i32_1 = arith.constant 0 : i32
    return %c0_i32, %c0_i32_0 : i32, i32
  }
  func.func @transform_3(%arg0: i32) -> (i32, i32) {
    %c0_i32 = arith.constant 0 : i32
    %c0_i32_0 = arith.constant 0 : i32
    return %arg0, %c0_i32 : i32, i32
  }
}

</mosaic_0001>

<llo_original>
// kernel: _lambda_.1
$region0: #{_lambda_.1}
  #allocation0 [shape = 'u32[]', space=smem, size = 0x4, offset = 0x4, fixed_abs, tag = 'smem constant byte address 0x4 - core index']
  #allocation1 [shape = 'u32[144,128]{1,0:T(1,128)}', space=vmem, size = 0x12000, scoped, tag = 'internal scratch']
  %s0 = inlined_call_operand.vmem [shape: s32[1,128], index: 0, kind: input, shape index: {}]
  %s1 = inlined_call_operand.vmem [shape: bf16[128,512], index: 1, kind: input, shape index: {}]
  %s2 = inlined_call_operand.vmem [shape: f32[1,512], index: 2, kind: input, shape index: {}]
  %s3 = inlined_call_operand.vmem [shape: f32[1,512], index: 3, kind: output, shape index: {}]
  %s4 = sld [smem:[#allocation0]]
  $region22: #{_lambda_.1} parent=0
    _
  %s6 = ssub.s32 1, %s4
  %s7 = scalar_select 0, %s6, %s4
  // Predicated region
  $region2: #{_lambda_.1} parent=0 // pred_check
    _
  $region3: #{_lambda_.1} parent=0 // pred_check_branch
    %9 = sbr.rel (0) target = $region5
  $region4: #{_lambda_.1} parent=0 // pred_region
    _
  $region5: #{_lambda_.1} parent=0 // pred_fallthru
    _
  // Predicated region
  $region6: #{_lambda_.1} parent=0 // pred_check
    _
  $region7: #{_lambda_.1} parent=0 // pred_check_branch
    %11 = sbr.rel (0) target = $region9
  $region8: #{_lambda_.1} parent=0 // pred_region
    _
  $region9: #{_lambda_.1} parent=0 // pred_fallthru
    _
  // Predicated region
  $region10: #{_lambda_.1} parent=0 // pred_check
    _
  $region11: #{_lambda_.1} parent=0 // pred_check_branch
    %13 = sbr.rel (0) target = $region13
  $region12: #{_lambda_.1} parent=0 // pred_region
    _
  $region13: #{_lambda_.1} parent=0 // pred_fallthru
    _
  %v15 = vld [vmem:[%s0] sm:$0x1]
  %v16 = vcvt.s32.f32 %v15
  %v17 = vpack.c.bf16 %v16, %v16
  %v18 = vld [vmem:[%s1] sm:$0xff]
  %v19 = vld [vmem:[%s1 + $0x8] sm:$0xff]
  %v20 = vld [vmem:[%s1 + $0x10] sm:$0xff]
  %v21 = vld [vmem:[%s1 + $0x18] sm:$0xff]
  %v22 = vld [vmem:[%s1 + $0x20] sm:$0xff]
  %v23 = vld [vmem:[%s1 + $0x28] sm:$0xff]
  %v24 = vld [vmem:[%s1 + $0x30] sm:$0xff]
  %v25 = vld [vmem:[%s1 + $0x38] sm:$0xff]
  %v26 = vld [vmem:[%s1 + $0x40] sm:$0xff]
  %v27 = vld [vmem:[%s1 + $0x48] sm:$0xff]
  %v28 = vld [vmem:[%s1 + $0x50] sm:$0xff]
  %v29 = vld [vmem:[%s1 + $0x58] sm:$0xff]
  %v30 = vld [vmem:[%s1 + $0x60] sm:$0xff]
  %v31 = vld [vmem:[%s1 + $0x68] sm:$0xff]
  %v32 = vld [vmem:[%s1 + $0x70] sm:$0xff]
  %v33 = vld [vmem:[%s1 + $0x78] sm:$0xff]
  %v34 = vld [vmem:[%s1 + $0x80] sm:$0xff]
  %v35 = vld [vmem:[%s1 + $0x88] sm:$0xff]
  %v36 = vld [vmem:[%s1 + $0x90] sm:$0xff]
  %v37 = vld [vmem:[%s1 + $0x98] sm:$0xff]
  %v38 = vld [vmem:[%s1 + $0xa0] sm:$0xff]
  %v39 = vld [vmem:[%s1 + $0xa8] sm:$0xff]
  %v40 = vld [vmem:[%s1 + $0xb0] sm:$0xff]
  %v41 = vld [vmem:[%s1 + $0xb8] sm:$0xff]
  %v42 = vld [vmem:[%s1 + $0xc0] sm:$0xff]
  %v43 = vld [vmem:[%s1 + $0xc8] sm:$0xff]
  %v44 = vld [vmem:[%s1 + $0xd0] sm:$0xff]
  %v45 = vld [vmem:[%s1 + $0xd8] sm:$0xff]
  %v46 = vld [vmem:[%s1 + $0xe0] sm:$0xff]
  %v47 = vld [vmem:[%s1 + $0xe8] sm:$0xff]
  %v48 = vld [vmem:[%s1 + $0xf0] sm:$0xff]
  %v49 = vld [vmem:[%s1 + $0xf8] sm:$0xff]
  %v82 = vunpack.c.l.b16 %v18
  %v83 = vunpack.c.h.b16 %v18
  %v84 = vunpack.c.l.b16 %v19
  %v85 = vunpack.c.h.b16 %v19
  %v86 = vunpack.c.l.b16 %v20
  %v87 = vunpack.c.h.b16 %v20
  %v88 = vunpack.c.l.b16 %v21
  %v89 = vunpack.c.h.b16 %v21
  %v90 = vunpack.c.l.b16 %v22
  %v91 = vunpack.c.h.b16 %v22
  %v92 = vunpack.c.l.b16 %v23
  %v93 = vunpack.c.h.b16 %v23
  %v94 = vunpack.c.l.b16 %v24
  %v95 = vunpack.c.h.b16 %v24
  %v96 = vunpack.c.l.b16 %v25
  %v97 = vunpack.c.h.b16 %v25
  %v98 = vunpack.c.l.b16 %v26
  %v99 = vunpack.c.h.b16 %v26
  %v100 = vunpack.c.l.b16 %v27
  %v101 = vunpack.c.h.b16 %v27
  %v102 = vunpack.c.l.b16 %v28
  %v103 = vunpack.c.h.b16 %v28
  %v104 = vunpack.c.l.b16 %v29
  %v105 = vunpack.c.h.b16 %v29
  %v106 = vunpack.c.l.b16 %v30
  %v107 = vunpack.c.h.b16 %v30
  %v108 = vunpack.c.l.b16 %v31
  %v109 = vunpack.c.h.b16 %v31
  %v110 = vunpack.c.l.b16 %v32
  %v111 = vunpack.c.h.b16 %v32
  %v112 = vunpack.c.l.b16 %v33
  %v113 = vunpack.c.h.b16 %v33
  %v114 = vunpack.c.l.b16 %v34
  %v115 = vunpack.c.h.b16 %v34
  %v116 = vunpack.c.l.b16 %v35
  %v117 = vunpack.c.h.b16 %v35
  %v118 = vunpack.c.l.b16 %v36
  %v119 = vunpack.c.h.b16 %v36
  %v120 = vunpack.c.l.b16 %v37
  %v121 = vunpack.c.h.b16 %v37
  %v122 = vunpack.c.l.b16 %v38
  %v123 = vunpack.c.h.b16 %v38
  %v124 = vunpack.c.l.b16 %v39
  %v125 = vunpack.c.h.b16 %v39
  %v126 = vunpack.c.l.b16 %v40
  %v127 = vunpack.c.h.b16 %v40
  %v128 = vunpack.c.l.b16 %v41
  %v129 = vunpack.c.h.b16 %v41
  %v130 = vunpack.c.l.b16 %v42
  %v131 = vunpack.c.h.b16 %v42
  %v132 = vunpack.c.l.b16 %v43
  %v133 = vunpack.c.h.b16 %v43
  %v134 = vunpack.c.l.b16 %v44
  %v135 = vunpack.c.h.b16 %v44
  %v136 = vunpack.c.l.b16 %v45
  %v137 = vunpack.c.h.b16 %v45
  %v138 = vunpack.c.l.b16 %v46
  %v139 = vunpack.c.h.b16 %v46
  %v140 = vunpack.c.l.b16 %v47
  %v141 = vunpack.c.h.b16 %v47
  %v142 = vunpack.c.l.b16 %v48
  %v143 = vunpack.c.h.b16 %v48
  %v144 = vunpack.c.l.b16 %v49
  %v145 = vunpack.c.h.b16 %v49
  %v146 = vpack.c.b16 %v86, %v82
  %v147 = vpack.c.b16 %v87, %v83
  %v148 = vpack.c.b16 %v88, %v84
  %v149 = vpack.c.b16 %v89, %v85
  %v150 = vpack.c.b16 %v94, %v90
  %v151 = vpack.c.b16 %v95, %v91
  %v152 = vpack.c.b16 %v96, %v92
  %v153 = vpack.c.b16 %v97, %v93
  %v154 = vpack.c.b16 %v102, %v98
  %v155 = vpack.c.b16 %v103, %v99
  %v156 = vpack.c.b16 %v104, %v100
  %v157 = vpack.c.b16 %v105, %v101
  %v158 = vpack.c.b16 %v110, %v106
  %v159 = vpack.c.b16 %v111, %v107
  %v160 = vpack.c.b16 %v112, %v108
  %v161 = vpack.c.b16 %v113, %v109
  %v162 = vpack.c.b16 %v118, %v114
  %v163 = vpack.c.b16 %v119, %v115
  %v164 = vpack.c.b16 %v120, %v116
  %v165 = vpack.c.b16 %v121, %v117
  %v166 = vpack.c.b16 %v126, %v122
  %v167 = vpack.c.b16 %v127, %v123
  %v168 = vpack.c.b16 %v128, %v124
  %v169 = vpack.c.b16 %v129, %v125
  %v170 = vpack.c.b16 %v134, %v130
  %v171 = vpack.c.b16 %v135, %v131
  %v172 = vpack.c.b16 %v136, %v132
  %v173 = vpack.c.b16 %v137, %v133
  %v174 = vpack.c.b16 %v142, %v138
  %v175 = vpack.c.b16 %v143, %v139
  %v176 = vpack.c.b16 %v144, %v140
  %v177 = vpack.c.b16 %v145, %v141
  %210 = vmatprep.subr.bf16.mxu0 %v147
  %211 = vmatpush1.bf16.msra.mxu0 %v146
  %212 = vmatprep.subr.bf16.mxu0 %v151
  %213 = vmatpush1.bf16.msra.mxu0 %v150
  %214 = vmatprep.subr.bf16.mxu0 %v155
  %215 = vmatpush1.bf16.msra.mxu0 %v154
  %216 = vmatprep.subr.bf16.mxu0 %v159
  %217 = vmatpush1.bf16.msra.mxu0 %v158
  %218 = vmatprep.subr.bf16.mxu0 %v163
  %219 = vmatpush1.bf16.msra.mxu0 %v162
  %220 = vmatprep.subr.bf16.mxu0 %v167
  %221 = vmatpush1.bf16.msra.mxu0 %v166
  %222 = vmatprep.subr.bf16.mxu0 %v171
  %223 = vmatpush1.bf16.msra.mxu0 %v170
  %224 = vmatprep.subr.bf16.mxu0 %v175
  %225 = vmatpush1.bf16.msra.mxu0 %v174
  %226 = vmatprep.subr.bf16.mxu0 0
  %227 = vmatpush1.bf16.msra.mxu0 0
  %228 = vmatprep.subr.bf16.mxu0 0
  %229 = vmatpush1.bf16.msra.mxu0 0
  %230 = vmatprep.subr.bf16.mxu0 0
  %231 = vmatpush1.bf16.msra.mxu0 0
  %232 = vmatprep.subr.bf16.mxu0 0
  %233 = vmatpush1.bf16.msra.mxu0 0
  %234 = vmatprep.subr.bf16.mxu0 0
  %235 = vmatpush1.bf16.msra.mxu0 0
  %236 = vmatprep.subr.bf16.mxu0 0
  %237 = vmatpush1.bf16.msra.mxu0 0
  %238 = vmatprep.subr.bf16.mxu0 0
  %239 = vmatpush1.bf16.msra.mxu0 0
  %240 = vmatprep.subr.bf16.mxu0 0
  %241 = vmatpush1.bf16.msra.mxu0 0
  %242 = vmatprep.mubr.bf16.mxu0 0
  %243 = vmatmul.mubr.bf16.gmra.mrb[0].mxu0 %v17
  %v244 = vpop.f32.mrb[0].mxu0
  %v245 = vadd.f32 0.0, %v244
  %v246 = vpop.f32.mrb[0].mxu0
  %v247 = vadd.f32 0.0, %v246
  %v248 = vpop.f32.mrb[0].mxu0
  %v249 = vpop.f32.mrb[0].mxu0
  %250 = vdwg.mxu0
  %251 = vmatprep.subr.bf16.mxu0 %v149
  %252 = vmatpush1.bf16.msra.mxu0 %v148
  %253 = vmatprep.subr.bf16.mxu0 %v153
  %254 = vmatpush1.bf16.msra.mxu0 %v152
  %255 = vmatprep.subr.bf16.mxu0 %v157
  %256 = vmatpush1.bf16.msra.mxu0 %v156
  %257 = vmatprep.subr.bf16.mxu0 %v161
  %258 = vmatpush1.bf16.msra.mxu0 %v160
  %259 = vmatprep.subr.bf16.mxu0 %v165
  %260 = vmatpush1.bf16.msra.mxu0 %v164
  %261 = vmatprep.subr.bf16.mxu0 %v169
  %262 = vmatpush1.bf16.msra.mxu0 %v168
  %263 = vmatprep.subr.bf16.mxu0 %v173
  %264 = vmatpush1.bf16.msra.mxu0 %v172
  %265 = vmatprep.subr.bf16.mxu0 %v177
  %266 = vmatpush1.bf16.msra.mxu0 %v176
  %267 = vmatprep.subr.bf16.mxu0 0
  %268 = vmatpush1.bf16.msra.mxu0 0
  %269 = vmatprep.subr.bf16.mxu0 0
  %270 = vmatpush1.bf16.msra.mxu0 0
  %271 = vmatprep.subr.bf16.mxu0 0
  %272 = vmatpush1.bf16.msra.mxu0 0
  %273 = vmatprep.subr.bf16.mxu0 0
  %274 = vmatpush1.bf16.msra.mxu0 0
  %275 = vmatprep.subr.bf16.mxu0 0
  %276 = vmatpush1.bf16.msra.mxu0 0
  %277 = vmatprep.subr.bf16.mxu0 0
  %278 = vmatpush1.bf16.msra.mxu0 0
  %279 = vmatprep.subr.bf16.mxu0 0
  %280 = vmatpush1.bf16.msra.mxu0 0
  %281 = vmatprep.subr.bf16.mxu0 0
  %282 = vmatpush1.bf16.msra.mxu0 0
  %283 = vmatprep.mubr.bf16.mxu0 0
  %284 = vmatmul.mubr.bf16.gmra.mrb[0].mxu0 %v17
  %v285 = vpop.f32.mrb[0].mxu0
  %v286 = vadd.f32 0.0, %v285
  %v287 = vpop.f32.mrb[0].mxu0
  %v288 = vadd.f32 0.0, %v287
  %v289 = vpop.f32.mrb[0].mxu0
  %v290 = vpop.f32.mrb[0].mxu0
  %291 = vdwg.mxu0
  %v292 = vld [vmem:[%s2] sm:$0xf]
  %v294 = vlaneseq
  %v295 = vshrl.u32 %v294, 7
  %v296 = vsub.s32 0, %v295
  %v297 = vrot.slane %v292, %v296
  %v298 = vlaneseq
  %v299 = vshrl.u32 %v298, 7
  %v300 = vsub.s32 1, %v299
  %v301 = vrot.slane %v292, %v300
  %v302 = vlaneseq
  %v303 = vshrl.u32 %v302, 7
  %v304 = vsub.s32 2, %v303
  %v305 = vrot.slane %v292, %v304
  %v306 = vlaneseq
  %v307 = vshrl.u32 %v306, 7
  %v308 = vsub.s32 3, %v307
  %v309 = vrot.slane %v292, %v308
  %vm314 = vcmp.eq.f32.partialorder %v245, %v297
  %vm315 = vcmp.eq.f32.partialorder %v247, %v301
  %vm316 = vcmp.eq.f32.partialorder %v286, %v305
  %vm317 = vcmp.eq.f32.partialorder %v288, %v309
  %v318 = vsel %vm314, 1, 0
  %v319 = vsel %vm315, 1, 0
  %v320 = vsel %vm316, 1, 0
  %v321 = vsel %vm317, 1, 0
  %v322 = vcvt.s32.f32 %v318
  %v323 = vcvt.s32.f32 %v319
  %v324 = vcvt.s32.f32 %v320
  %v325 = vcvt.s32.f32 %v321
  %v330 = vcombine.low %v322, %v323
  %v331 = vcombine.low %v324, %v325
  %v333 = vunpack.c.l.s4 1966171168
  %v334 = vunpack.c.0.s8 %v333
  %v335 = vlaneseq
  %v336 = vshrl.u32 %v335, 7
  %v337 = vsub.s32 %v334, %v336
  %v338 = vrot.slane %v330, %v337
  %v340 = vunpack.c.l.s4 1966171168
  %v341 = vunpack.c.0.s8 %v340
  %v342 = vlaneseq
  %v343 = vshrl.u32 %v342, 7
  %v344 = vsub.s32 %v341, %v343
  %v345 = vrot.slane %v331, %v344
  %v346 = vcombine.low %v338, %v345
  %v348 = vunpack.c.l.s4 1966171168
  %v349 = vunpack.c.0.s8 %v348
  %v350 = vlaneseq
  %v351 = vshrl.u32 %v350, 7
  %v352 = vsub.s32 %v349, %v351
  %v353 = vrot.slane %v346, %v352
  %v355 = vlaneseq
  %vm356 = vcmp.ge.s32.totalorder %v355, 0
  %vm357 = vcmp.lt.s32.totalorder %v355, 512
  %vm358 = vmand %vm356, %vm357
  %359 = vst.msk [vmem:[%s3] sm:$0xf] %vm358, %v353
  // Predicated region
  $region14: #{_lambda_.1} parent=0 // pred_check
    _
  $region15: #{_lambda_.1} parent=0 // pred_check_branch
    %361 = sbr.rel (0) target = $region17
  $region16: #{_lambda_.1} parent=0 // pred_region
    _
  $region17: #{_lambda_.1} parent=0 // pred_fallthru
    _
  // Predicated region
  $region18: #{_lambda_.1} parent=0 // pred_check
    _
  $region19: #{_lambda_.1} parent=0 // pred_check_branch
    %363 = sbr.rel (0) target = $region21
  $region20: #{_lambda_.1} parent=0 // pred_region
    _
  $region21: #{_lambda_.1} parent=0 // pred_fallthru
    _

</llo_original>
